<compile_context>
chip_gen: v7x
topology: tpu7x:2x2x1
jax: 0.10.0
libtpu: 0.0.40
codegen_flags: <defaults>
</compile_context>

<pallas_src>
import functools

import jax
import jax.numpy as jnp
from jax.experimental import pallas as pl
from jax.experimental.pallas import tpu as pltpu

_LANE = 128
_SUBLANE = 8
_CHUNK_ROWS = 512           # rows per in-kernel chunk (keeps temporaries in vregs)
_MAX_TILE_ROWS = 8192       # 8192x128 f32 = 4 MiB per input block -> 16 MiB double-buffered
_MIN_EXACT_TILE_ROWS = 2048 # smallest "exact divisor" tile worth taking over a masked tail
_VMEM_LIMIT_BYTES = 40 << 20  # explicit: v5e's 16 MiB default scoped VMEM is too small


def _round_up(x, m):
    return ((x + m - 1) // m) * m


def _min_row_multiple(dtype):
    # sublane tiling requirement: (8,128) for 4-byte, (16,128) 2-byte, (32,128) 1-byte
    return {4: 8, 2: 16, 1: 32}.get(jnp.dtype(dtype).itemsize, 8)


def _pick_chunk_rows(tile_r, round_to):
    """Largest divisor of tile_r that is <= _CHUNK_ROWS and a multiple of round_to."""
    if tile_r <= _CHUNK_ROWS:
        return tile_r
    cand = (_CHUNK_ROWS // round_to) * round_to
    while cand >= round_to:
        if tile_r % cand == 0:
            return cand
        cand -= round_to
    return round_to


def _fhalf_kernel(pr_ref, gt_ref, out_ref, tp_acc, p_acc, g_acc, *,
                  tile_r, chunk_r, unroll, blocks_per_split,
                  full_rows, rem_lanes, any_mask):
    """Streams (tile_r, 128) tiles in <=512-row chunks; accumulates (8, 128)
    partial sums in VMEM (pure VPU/EUP work) and emits per-split partials on the
    last step of the inner (reduction) grid axis.  Only the tail block (if any)
    pays for the iota/compare/select mask."""
    c = pl.program_id(0)
    i = pl.program_id(1)

    @pl.when(i == 0)
    def _init():
        tp_acc[...] = jnp.zeros_like(tp_acc)
        p_acc[...] = jnp.zeros_like(p_acc)
        g_acc[...] = jnp.zeros_like(g_acc)

    block_id = c * blocks_per_split + i
    n_chunks = tile_r // chunk_r
    groups = chunk_r // _SUBLANE

    def accumulate(masked):
        def body(k, carry):
            r0 = pl.multiple_of(k * chunk_r, chunk_r)
            # Native-dtype loads; upcast in-register only (keeps HBM traffic at
            # the input width, works on v5e without bf16 VPU/EUP).
            p = jax.nn.sigmoid(pr_ref[pl.ds(r0, chunk_r), :].astype(jnp.float32))
            g = gt_ref[pl.ds(r0, chunk_r), :].astype(jnp.float32)
            if masked:
                # Select-before-use: garbage from the padded tail block never
                # reaches any arithmetic that could propagate NaN/Inf.
                row = (block_id * tile_r + r0
                       + jax.lax.broadcasted_iota(jnp.int32, (chunk_r, _LANE), 0))
                valid = row < full_rows
                if rem_lanes:
                    lane = jax.lax.broadcasted_iota(jnp.int32, (chunk_r, _LANE), 1)
                    valid = valid | ((row == full_rows) & (lane < rem_lanes))
                p = jnp.where(valid, p, 0.0)
                g = jnp.where(valid, g, 0.0)
            # Fold (chunk_r, 128) -> (8, 128) with vreg-wise adds only.
            tp_acc[...] += jnp.sum((p * g).reshape(groups, _SUBLANE, _LANE), axis=0)
            p_acc[...] += jnp.sum(p.reshape(groups, _SUBLANE, _LANE), axis=0)
            g_acc[...] += jnp.sum(g.reshape(groups, _SUBLANE, _LANE), axis=0)
            return carry
        jax.lax.fori_loop(0, n_chunks, body, 0,
                          unroll=(unroll if not masked else False))

    if any_mask:
        tail = (block_id + 1) * tile_r > full_rows

        @pl.when(jnp.logical_not(tail))
        def _fast():
            accumulate(False)

        @pl.when(tail)
        def _masked():
            accumulate(True)
    else:
        accumulate(False)

    @pl.when(i == pl.num_programs(1) - 1)
    def _finalize():
        out_ref[0, 0] = tp_acc[...]
        out_ref[0, 1] = p_acc[...]
        out_ref[0, 2] = g_acc[...]


def fhalf_with_logits_loss(y_pr, y_gt, *, beta=0.5, eps=1e-12):
    """1 - Fbeta(sigmoid(y_pr), y_gt) via a single streaming Pallas reduction."""
    assert y_pr.shape == y_gt.shape
    # Keep native dtypes (f32/bf16/int8 all fine); only bool needs widening.
    if y_pr.dtype == jnp.bool_:
        y_pr = y_pr.astype(jnp.float32)
    if y_gt.dtype == jnp.bool_:
        y_gt = y_gt.astype(jnp.int8)

    n = y_pr.size
    pr_flat = y_pr.reshape(-1)
    gt_flat = y_gt.reshape(-1)

    lane_pad = (-n) % _LANE
    if lane_pad:
        # Rare ragged case: pad values are irrelevant (the tail lanes are masked
        # in-kernel), so zero padding is dtype-safe for every input dtype.
        # TODO(synk): avoid this HBM copy by summing the <128-element tail in the wrapper.
        pr_flat = jnp.pad(pr_flat, (0, lane_pad))
        gt_flat = jnp.pad(gt_flat, (0, lane_pad))

    rows = (n + lane_pad) // _LANE
    pr2d = pr_flat.reshape(rows, _LANE)
    gt2d = gt_flat.reshape(rows, _LANE)

    round_to = max(_min_row_multiple(pr2d.dtype), _min_row_multiple(gt2d.dtype))
    if rows <= _MAX_TILE_ROWS:
        tile_r = _round_up(rows, round_to)
    else:
        # Prefer a tile that divides rows exactly so no step ever needs the mask.
        tile_r = _MAX_TILE_ROWS
        for cand in range(_MAX_TILE_ROWS, _MIN_EXACT_TILE_ROWS - 1, -_CHUNK_ROWS):
            if rows % cand == 0:
                tile_r = cand
                break

    blocks_total = pl.cdiv(rows, tile_r)
    # Leading "parallel" axis: splits the stream across both TensorCores on v7x;
    # on single-TC chips it just runs sequentially (at most one fully-masked
    # duplicate block of overhead when blocks_total is odd).
    n_splits = 2 if blocks_total >= 2 else 1
    blocks_per_split = pl.cdiv(blocks_total, n_splits)
    padded_blocks = n_splits * blocks_per_split

    full_rows = n // _LANE
    rem_lanes = n % _LANE
    any_mask = (rem_lanes != 0) or (blocks_total * tile_r != rows) \
        or (padded_blocks != blocks_total)

    chunk_r = _pick_chunk_rows(tile_r, round_to)
    n_chunks = tile_r // chunk_r
    unroll = n_chunks <= 16

    last_block = blocks_total - 1

    def idx_map(c, i):
        # Clamp so a duplicate trailing block (odd blocks_total split 2 ways)
        # never produces an out-of-range block index; its data is fully masked.
        return (jnp.minimum(c * blocks_per_split + i, last_block), 0)

    kernel = functools.partial(
        _fhalf_kernel,
        tile_r=tile_r, chunk_r=chunk_r, unroll=unroll,
        blocks_per_split=blocks_per_split,
        full_rows=full_rows, rem_lanes=rem_lanes, any_mask=any_mask)

    cost = pl.CostEstimate(
        flops=int(5 * n),
        transcendentals=int(n),
        bytes_accessed=int(pr2d.size * pr2d.dtype.itemsize
                           + gt2d.size * gt2d.dtype.itemsize))

    partials = pl.pallas_call(
        kernel,
        out_shape=jax.ShapeDtypeStruct((n_splits, 3, _SUBLANE, _LANE), jnp.float32),
        grid_spec=pltpu.PrefetchScalarGridSpec(
            num_scalar_prefetch=0,
            grid=(n_splits, blocks_per_split),
            in_specs=[
                pl.BlockSpec((tile_r, _LANE), idx_map),
                pl.BlockSpec((tile_r, _LANE), idx_map),
            ],
            out_specs=pl.BlockSpec((1, 3, _SUBLANE, _LANE),
                                   lambda c, i: (c, 0, 0, 0)),
            scratch_shapes=[pltpu.VMEM((_SUBLANE, _LANE), jnp.float32)
                            for _ in range(3)],
        ),
        compiler_params=pltpu.CompilerParams(
            dimension_semantics=("parallel", "arbitrary"),
            vmem_limit_bytes=_VMEM_LIMIT_BYTES),
        cost_estimate=cost,
    )(pr2d, gt2d)

    # Combine per-split partial sums (tiny: n_splits*3*8*128 f32) and finish the
    # Fbeta score in the wrapper.
    tp = jnp.sum(partials[:, 0])
    sp = jnp.sum(partials[:, 1])
    sg = jnp.sum(partials[:, 2])
    fp = sp - tp
    fn = sg - tp
    b2 = beta * beta
    score = ((1.0 + b2) * tp + eps) / ((1.0 + b2) * tp + b2 * fn + fp + eps)
    return 1.0 - score


def _reference_loss(y_pr, y_gt, beta=0.5, eps=1e-12):
    p = jax.nn.sigmoid(y_pr.astype(jnp.float32))
    g = y_gt.astype(jnp.float32)
    tp = jnp.sum(p * g)
    fp = jnp.sum(p) - tp
    fn = jnp.sum(g) - tp
    b2 = beta * beta
    score = ((1.0 + b2) * tp + eps) / ((1.0 + b2) * tp + b2 * fn + fp + eps)
    return 1.0 - score


if __name__ == "__main__":
    key = jax.random.PRNGKey(0)
    k1, k2 = jax.random.split(key)
    # Small NCHW shapes consistent with a segmentation logits/mask pair.
    B, C, H, W = 2, 4, 16, 16
    y_pr = jax.random.normal(k1, (B, C, H, W), dtype=jnp.float32)
    y_gt = (jax.random.uniform(k2, (B, C, H, W)) > 0.7).astype(jnp.float32)

    loss = jax.jit(fhalf_with_logits_loss)(y_pr, y_gt)
    loss = jax.block_until_ready(loss)

    ref = _reference_loss(y_pr, y_gt)
    assert jnp.allclose(loss, ref, rtol=1e-5, atol=1e-6), (loss, ref)
    print("KERNEL_OK")
</pallas_src>

<mosaic_0001>
module attributes {stable_mosaic.version = 11 : i64} {
  func.func @_fhalf_kernel(%arg0: i32, %arg1: i32, %arg2: memref<16x128xf32, #tpu.memory_space<vmem>>, %arg3: memref<16x128xf32, #tpu.memory_space<vmem>>, %arg4: memref<1x3x8x128xf32, #tpu.memory_space<vmem>>, %arg5: memref<8x128xf32, #tpu.memory_space<vmem>>, %arg6: memref<8x128xf32, #tpu.memory_space<vmem>>, %arg7: memref<8x128xf32, #tpu.memory_space<vmem>>) attributes {dimension_semantics = [#tpu.dimension_semantics<parallel>, #tpu.dimension_semantics<arbitrary>], iteration_bounds = array<i64: 1, 1>, scalar_prefetch = 0 : i64, scratch_operands = 3 : i64, tpu.core_type = #tpu.core_type<tc>, window_params = [{transform_indices = @transform_0, window_bounds = array<i64: 16, 128>}, {transform_indices = @transform_1, window_bounds = array<i64: 16, 128>}, {transform_indices = @transform_2, window_bounds = array<i64: 1, 3, 8, 128>}]} {
    %c0_i32 = arith.constant 0 : i32
    %0 = arith.cmpi eq, %arg1, %c0_i32 : i32
    %1 = arith.extui %0 : i1 to i32
    %c0_i32_0 = arith.constant 0 : i32
    %2 = arith.cmpi ne, %1, %c0_i32_0 : i32
    scf.if %2 {
      %cst_20 = arith.constant 0.000000e+00 : f32
      %33 = vector.broadcast %cst_20 : f32 to vector<8x128xf32>
      %c0_21 = arith.constant 0 : index
      %c0_22 = arith.constant 0 : index
      %34 = vector.load %arg5[%c0_21, %c0_22] : memref<8x128xf32, #tpu.memory_space<vmem>>, vector<8x128xf32>
      tpu.vector_store %arg5[%c0_21, %c0_22], %33 {strides = array<i32>} : memref<8x128xf32, #tpu.memory_space<vmem>>, vector<8x128xf32>,
      %cst_23 = arith.constant 0.000000e+00 : f32
      %35 = vector.broadcast %cst_23 : f32 to vector<8x128xf32>
      %c0_24 = arith.constant 0 : index
      %c0_25 = arith.constant 0 : index
      %36 = vector.load %arg6[%c0_24, %c0_25] : memref<8x128xf32, #tpu.memory_space<vmem>>, vector<8x128xf32>
      tpu.vector_store %arg6[%c0_24, %c0_25], %35 {strides = array<i32>} : memref<8x128xf32, #tpu.memory_space<vmem>>, vector<8x128xf32>,
      %cst_26 = arith.constant 0.000000e+00 : f32
      %37 = vector.broadcast %cst_26 : f32 to vector<8x128xf32>
      %c0_27 = arith.constant 0 : index
      %c0_28 = arith.constant 0 : index
      %38 = vector.load %arg7[%c0_27, %c0_28] : memref<8x128xf32, #tpu.memory_space<vmem>>, vector<8x128xf32>
      tpu.vector_store %arg7[%c0_27, %c0_28], %37 {strides = array<i32>} : memref<8x128xf32, #tpu.memory_space<vmem>>, vector<8x128xf32>,
    } else {
    }
    %c0_i32_1 = arith.constant 0 : i32
    %c16_i32 = arith.constant 16 : i32
    %3 = arith.muli %c0_i32_1, %c16_i32 : i32
    %4 = tpu.assume_multiple %3, 16 : i32
    %5 = arith.index_cast %4 : i32 to index
    %c0 = arith.constant 0 : index
    %6 = vector.load %arg2[%5, %c0] : memref<16x128xf32, #tpu.memory_space<vmem>>, vector<16x128xf32>
    %7 = arith.negf %6 : vector<16x128xf32>
    %8 = math.exp %7 : vector<16x128xf32>
    %cst = arith.constant 1.000000e+00 : f32
    %9 = vector.broadcast %cst : f32 to vector<16x128xf32>
    %10 = arith.addf %9, %8 : vector<16x128xf32>
    %11 = arith.divf %9, %10 : vector<16x128xf32>
    %12 = arith.index_cast %4 : i32 to index
    %c0_2 = arith.constant 0 : index
    %13 = vector.load %arg3[%12, %c0_2] : memref<16x128xf32, #tpu.memory_space<vmem>>, vector<16x128xf32>
    %c0_3 = arith.constant 0 : index
    %c0_4 = arith.constant 0 : index
    %14 = vector.load %arg5[%c0_3, %c0_4] : memref<8x128xf32, #tpu.memory_space<vmem>>, vector<8x128xf32>
    %15 = arith.mulf %11, %13 : vector<16x128xf32>
    %16 = vector.shape_cast %15 : vector<16x128xf32> to vector<2x8x128xf32>
    %cst_5 = arith.constant dense<0.000000e+00> : vector<8x128xf32>
    %17 = vector.multi_reduction <add>, %16, %cst_5 [0] : vector<2x8x128xf32> to vector<8x128xf32>
    %18 = arith.addf %14, %17 : vector<8x128xf32>
    %c0_6 = arith.constant 0 : index
    %c0_7 = arith.constant 0 : index
    %19 = vector.load %arg5[%c0_6, %c0_7] : memref<8x128xf32, #tpu.memory_space<vmem>>, vector<8x128xf32>
    tpu.vector_store %arg5[%c0_6, %c0_7], %18 {strides = array<i32>} : memref<8x128xf32, #tpu.memory_space<vmem>>, vector<8x128xf32>,
    %c0_8 = arith.constant 0 : index
    %c0_9 = arith.constant 0 : index
    %20 = vector.load %arg6[%c0_8, %c0_9] : memref<8x128xf32, #tpu.memory_space<vmem>>, vector<8x128xf32>
    %21 = vector.shape_cast %11 : vector<16x128xf32> to vector<2x8x128xf32>
    %cst_10 = arith.constant dense<0.000000e+00> : vector<8x128xf32>
    %22 = vector.multi_reduction <add>, %21, %cst_10 [0] : vector<2x8x128xf32> to vector<8x128xf32>
    %23 = arith.addf %20, %22 : vector<8x128xf32>
    %c0_11 = arith.constant 0 : index
    %c0_12 = arith.constant 0 : index
    %24 = vector.load %arg6[%c0_11, %c0_12] : memref<8x128xf32, #tpu.memory_space<vmem>>, vector<8x128xf32>
    tpu.vector_store %arg6[%c0_11, %c0_12], %23 {strides = array<i32>} : memref<8x128xf32, #tpu.memory_space<vmem>>, vector<8x128xf32>,
    %c0_13 = arith.constant 0 : index
    %c0_14 = arith.constant 0 : index
    %25 = vector.load %arg7[%c0_13, %c0_14] : memref<8x128xf32, #tpu.memory_space<vmem>>, vector<8x128xf32>
    %26 = vector.shape_cast %13 : vector<16x128xf32> to vector<2x8x128xf32>
    %cst_15 = arith.constant dense<0.000000e+00> : vector<8x128xf32>
    %27 = vector.multi_reduction <add>, %26, %cst_15 [0] : vector<2x8x128xf32> to vector<8x128xf32>
    %28 = arith.addf %25, %27 : vector<8x128xf32>
    %c0_16 = arith.constant 0 : index
    %c0_17 = arith.constant 0 : index
    %29 = vector.load %arg7[%c0_16, %c0_17] : memref<8x128xf32, #tpu.memory_space<vmem>>, vector<8x128xf32>
    tpu.vector_store %arg7[%c0_16, %c0_17], %28 {strides = array<i32>} : memref<8x128xf32, #tpu.memory_space<vmem>>, vector<8x128xf32>,
    %c1_i32 = arith.constant 1 : i32
    %c0_i32_18 = arith.constant 0 : i32
    %30 = arith.cmpi eq, %arg1, %c0_i32_18 : i32
    %31 = arith.extui %30 : i1 to i32
    %c0_i32_19 = arith.constant 0 : i32
    %32 = arith.cmpi ne, %31, %c0_i32_19 : i32
    scf.if %32 {
      %c0_20 = arith.constant 0 : index
      %c0_21 = arith.constant 0 : index
      %33 = vector.load %arg5[%c0_20, %c0_21] : memref<8x128xf32, #tpu.memory_space<vmem>>, vector<8x128xf32>
      %c0_22 = arith.constant 0 : index
      %c0_23 = arith.constant 0 : index
      %c0_24 = arith.constant 0 : index
      %c0_25 = arith.constant 0 : index
      %34 = vector.load %arg4[%c0_22, %c0_23, %c0_24, %c0_25] : memref<1x3x8x128xf32, #tpu.memory_space<vmem>>, vector<1x1x8x128xf32>
      %35 = vector.shape_cast %34 : vector<1x1x8x128xf32> to vector<8x128xf32>
      %36 = vector.shape_cast %33 : vector<8x128xf32> to vector<1x1x8x128xf32>
      tpu.vector_store %arg4[%c0_22, %c0_23, %c0_24, %c0_25], %36 {strides = array<i32>} : memref<1x3x8x128xf32, #tpu.memory_space<vmem>>, vector<1x1x8x128xf32>,
      %c0_26 = arith.constant 0 : index
      %c0_27 = arith.constant 0 : index
      %37 = vector.load %arg6[%c0_26, %c0_27] : memref<8x128xf32, #tpu.memory_space<vmem>>, vector<8x128xf32>
      %c0_28 = arith.constant 0 : index
      %c1 = arith.constant 1 : index
      %c0_29 = arith.constant 0 : index
      %c0_30 = arith.constant 0 : index
      %38 = vector.load %arg4[%c0_28, %c1, %c0_29, %c0_30] : memref<1x3x8x128xf32, #tpu.memory_space<vmem>>, vector<1x1x8x128xf32>
      %39 = vector.shape_cast %38 : vector<1x1x8x128xf32> to vector<8x128xf32>
      %40 = vector.shape_cast %37 : vector<8x128xf32> to vector<1x1x8x128xf32>
      tpu.vector_store %arg4[%c0_28, %c1, %c0_29, %c0_30], %40 {strides = array<i32>} : memref<1x3x8x128xf32, #tpu.memory_space<vmem>>, vector<1x1x8x128xf32>,
      %c0_31 = arith.constant 0 : index
      %c0_32 = arith.constant 0 : index
      %41 = vector.load %arg7[%c0_31, %c0_32] : memref<8x128xf32, #tpu.memory_space<vmem>>, vector<8x128xf32>
      %c0_33 = arith.constant 0 : index
      %c2 = arith.constant 2 : index
      %c0_34 = arith.constant 0 : index
      %c0_35 = arith.constant 0 : index
      %42 = vector.load %arg4[%c0_33, %c2, %c0_34, %c0_35] : memref<1x3x8x128xf32, #tpu.memory_space<vmem>>, vector<1x1x8x128xf32>
      %43 = vector.shape_cast %42 : vector<1x1x8x128xf32> to vector<8x128xf32>
      %44 = vector.shape_cast %41 : vector<8x128xf32> to vector<1x1x8x128xf32>
      tpu.vector_store %arg4[%c0_33, %c2, %c0_34, %c0_35], %44 {strides = array<i32>} : memref<1x3x8x128xf32, #tpu.memory_space<vmem>>, vector<1x1x8x128xf32>,
    } else {
    }
    return
  }
  func.func @transform_0(%arg0: i32, %arg1: i32) -> (i32, i32) {
    %c1_i32 = arith.constant 1 : i32
    %0 = arith.muli %arg0, %c1_i32 : i32
    %1 = arith.addi %0, %arg1 : i32
    %c0_i32 = arith.constant 0 : i32
    %2 = arith.minsi %1, %c0_i32 : i32
    %c0_i32_0 = arith.constant 0 : i32
    %c0_i32_1 = arith.constant 0 : i32
    return %2, %c0_i32_0 : i32, i32
  }
  func.func @transform_1(%arg0: i32, %arg1: i32) -> (i32, i32) {
    %c1_i32 = arith.constant 1 : i32
    %0 = arith.muli %arg0, %c1_i32 : i32
    %1 = arith.addi %0, %arg1 : i32
    %c0_i32 = arith.constant 0 : i32
    %2 = arith.minsi %1, %c0_i32 : i32
    %c0_i32_0 = arith.constant 0 : i32
    %c0_i32_1 = arith.constant 0 : i32
    return %2, %c0_i32_0 : i32, i32
  }
  func.func @transform_2(%arg0: i32, %arg1: i32) -> (i32, i32, i32, i32) {
    %c0_i32 = arith.constant 0 : i32
    %c0_i32_0 = arith.constant 0 : i32
    %c0_i32_1 = arith.constant 0 : i32
    %c0_i32_2 = arith.constant 0 : i32
    return %arg0, %c0_i32, %c0_i32_0, %c0_i32_1 : i32, i32, i32, i32
  }
}

</mosaic_0001>

<llo_original>
// kernel: fhalf_with_logits_loss.1
$region0: #{fhalf_with_logits_loss.1}
  #allocation0 [shape = 'u32[]', space=smem, size = 0x4, offset = 0x4, fixed_abs, tag = 'smem constant byte address 0x4 - core index']
  #allocation1 [shape = 'u32[144,128]{1,0:T(1,128)}', space=vmem, size = 0x12000, scoped, tag = 'internal scratch']
  #allocation2 [shape = 'f32[8,128]{1,0:T(8,128)}', space=vmem, size = 0x1000, scoped, tag = 'scratch operand']
  #allocation3 [shape = 'f32[8,128]{1,0:T(8,128)}', space=vmem, size = 0x1000, scoped, tag = 'scratch operand']
  #allocation4 [shape = 'f32[8,128]{1,0:T(8,128)}', space=vmem, size = 0x1000, scoped, tag = 'scratch operand']
  %s0 = inlined_call_operand.vmem [shape: f32[16,128], index: 0, kind: input, shape index: {}]
  %s1 = inlined_call_operand.vmem [shape: f32[16,128], index: 1, kind: input, shape index: {}]
  %s2 = inlined_call_operand.vmem [shape: f32[1,3,8,128], index: 2, kind: output, shape index: {}]
  %s3 = sld [smem:[#allocation0]]
  $region26: #{fhalf_with_logits_loss.1} parent=0
    _
  %s5 = ssub.s32 1, %s3
  %s6 = scalar_select 0, %s5, %s3
  // Predicated region
  $region2: #{fhalf_with_logits_loss.1} parent=0 // pred_check
    _
  $region3: #{fhalf_with_logits_loss.1} parent=0 // pred_check_branch
    %8 = sbr.rel (0) target = $region5
  $region4: #{fhalf_with_logits_loss.1} parent=0 // pred_region
    %s9 = sadd.s32 0, 0
    %p10 = scmp.lt.s32.totalorder %s9, 0
    %s11 = scalar_select %p10, %s9, 0
    %s12 = smul.u32 2, %s11
    %p13 = scmp.lt.s32.totalorder %s12, 1
    %s14 = scalar_select %p13, %s12, 1
    %s15 = smul.addr %s14, 8
    %s16 = scalar_lea.vmem %s0, %s15
    %s17 = sadd.s32 0, 0
    %p18 = scmp.lt.s32.totalorder %s17, 0
    %s19 = scalar_select %p18, %s17, 0
    %s20 = smul.u32 2, %s19
  $region5: #{fhalf_with_logits_loss.1} parent=0 // pred_fallthru
    _
  // Predicated region
  $region6: #{fhalf_with_logits_loss.1} parent=0 // pred_check
    _
  $region7: #{fhalf_with_logits_loss.1} parent=0 // pred_check_branch
    %22 = sbr.rel (0) target = $region9
  $region8: #{fhalf_with_logits_loss.1} parent=0 // pred_region
    %s23 = sadd.s32 0, 0
    %p24 = scmp.lt.s32.totalorder %s23, 0
    %s25 = scalar_select %p24, %s23, 0
    %s26 = smul.u32 2, %s25
    %p27 = scmp.lt.s32.totalorder %s26, 1
    %s28 = scalar_select %p27, %s26, 1
    %s29 = smul.addr %s28, 8
    %s30 = scalar_lea.vmem %s1, %s29
    %s31 = sadd.s32 0, 0
    %p32 = scmp.lt.s32.totalorder %s31, 0
    %s33 = scalar_select %p32, %s31, 0
    %s34 = smul.u32 2, %s33
  $region9: #{fhalf_with_logits_loss.1} parent=0 // pred_fallthru
    _
  %s35 = sadd.s32 0, 0
  %p36 = scmp.lt.s32.totalorder %s35, 0
  %s37 = scalar_select %p36, %s35, 0
  %s38 = smul.u32 2, %s37
  %p39 = scmp.lt.s32.totalorder %s38, 1
  %s40 = scalar_select %p39, %s38, 1
  %s41 = smul.addr %s40, 8
  %s42 = scalar_lea.vmem %s0, %s41
  %s43 = sadd.s32 0, 0
  %p44 = scmp.lt.s32.totalorder %s43, 0
  %s45 = scalar_select %p44, %s43, 0
  %s46 = smul.u32 2, %s45
  %p47 = scmp.lt.s32.totalorder %s46, 1
  %s48 = scalar_select %p47, %s46, 1
  %s49 = smul.addr %s48, 8
  %s50 = scalar_lea.vmem %s1, %s49
  %s51 = sadd.s32 0, 0
  %p52 = scmp.lt.s32.totalorder %s51, 0
  %s53 = scalar_select %p52, %s51, 0
  %s54 = smul.u32 2, %s53
  %p55 = scmp.lt.s32.totalorder %s54, 1
  %s56 = scalar_select %p55, %s54, 1
  %s57 = smul.addr %s56, 8
  %s58 = scalar_lea.vmem %s0, %s57
  %s59 = sadd.s32 0, 0
  %p60 = scmp.lt.s32.totalorder %s59, 0
  %s61 = scalar_select %p60, %s59, 0
  %s62 = smul.u32 2, %s61
  %s63 = sadd.s32 0, 0
  %p64 = scmp.lt.s32.totalorder %s63, 0
  %s65 = scalar_select %p64, %s63, 0
  %s66 = smul.u32 2, %s65
  %p67 = scmp.lt.s32.totalorder %s66, 1
  %s68 = scalar_select %p67, %s66, 1
  %s69 = smul.addr %s68, 8
  %s70 = scalar_lea.vmem %s1, %s69
  %s71 = sadd.s32 0, 0
  %p72 = scmp.lt.s32.totalorder %s71, 0
  %s73 = scalar_select %p72, %s71, 0
  %s74 = smul.u32 2, %s73
  %p75 = scmp.eq.s32.totalorder 0, 0
  // Predicated region
  $region10: #{fhalf_with_logits_loss.1} parent=0 // pred_check
    %p76 = pneg %p75
  $region11: #{fhalf_with_logits_loss.1} parent=0 // pred_check_branch
    %78 = sbr.rel (%p76) target = $region13
  $region12: #{fhalf_with_logits_loss.1} parent=0 // pred_region
    %79 = vst [vmem:[#allocation2] sm:$0xff] 0.0
    %80 = vst [vmem:[#allocation3] sm:$0xff] 0.0
    %81 = vst [vmem:[#allocation4] sm:$0xff] 0.0
  $region13: #{fhalf_with_logits_loss.1} parent=0 // pred_fallthru
    _
  %v82 = vld [vmem:[%s58] sm:$0xff]
  %v83 = vld [vmem:[%s58 + $0x8] sm:$0xff]
  %v84 = vxor.u32 %v82, 2147483648
  %v85 = vxor.u32 %v83, 2147483648
  %v86 = vmul.f32 %v84, 1.442695
  %v87 = vpow.pop %v86
  %v88 = vmul.f32 %v85, 1.442695
  %v89 = vpow.pop %v88
  %v90 = vadd.f32 %v87, 1.0
  %v91 = vadd.f32 %v89, 1.0
  %v92 = vrcp.pop %v90
  %v93 = vmul.f32 1.0, %v92
  %v94 = vrcp.pop %v91
  %v95 = vmul.f32 1.0, %v94
  %v96 = vld [vmem:[%s70] sm:$0xff]
  %v97 = vld [vmem:[%s70 + $0x8] sm:$0xff]
  %v98 = vld [vmem:[#allocation2] sm:$0xff]
  %v99 = vmul.f32 %v93, %v96
  %v100 = vmul.f32 %v95, %v97
  %v101 = vadd.f32 %v99, %v100
  %v102 = vadd.f32 %v98, %v101
  %103 = vst [vmem:[#allocation2] sm:$0xff] %v102
  %v104 = vld [vmem:[#allocation3] sm:$0xff]
  %v105 = vadd.f32 %v93, %v95
  %v106 = vadd.f32 %v104, %v105
  %107 = vst [vmem:[#allocation3] sm:$0xff] %v106
  %v108 = vld [vmem:[#allocation4] sm:$0xff]
  %v109 = vadd.f32 %v96, %v97
  %v110 = vadd.f32 %v108, %v109
  %111 = vst [vmem:[#allocation4] sm:$0xff] %v110
  // Predicated region
  $region14: #{fhalf_with_logits_loss.1} parent=0 // pred_check
    %p112 = pneg %p75
  $region15: #{fhalf_with_logits_loss.1} parent=0 // pred_check_branch
    %114 = sbr.rel (%p112) target = $region17
  $region16: #{fhalf_with_logits_loss.1} parent=0 // pred_region
    %v115 = vld [vmem:[#allocation2] sm:$0xff]
    %116 = vst [vmem:[%s2] sm:$0xff] %v115
    %v117 = vld [vmem:[#allocation3] sm:$0xff]
    %s118 = scalar_lea.vmem %s2, 8
    %119 = vst [vmem:[%s118] sm:$0xff] %v117
    %v120 = vld [vmem:[#allocation4] sm:$0xff]
    %s121 = scalar_lea.vmem %s2, 16
    %122 = vst [vmem:[%s121] sm:$0xff] %v120
  $region17: #{fhalf_with_logits_loss.1} parent=0 // pred_fallthru
    _
  // Predicated region
  $region18: #{fhalf_with_logits_loss.1} parent=0 // pred_check
    _
  $region19: #{fhalf_with_logits_loss.1} parent=0 // pred_check_branch
    %124 = sbr.rel (0) target = $region21
  $region20: #{fhalf_with_logits_loss.1} parent=0 // pred_region
    _
  $region21: #{fhalf_with_logits_loss.1} parent=0 // pred_fallthru
    _
  // Predicated region
  $region22: #{fhalf_with_logits_loss.1} parent=0 // pred_check
    _
  $region23: #{fhalf_with_logits_loss.1} parent=0 // pred_check_branch
    %126 = sbr.rel (0) target = $region25
  $region24: #{fhalf_with_logits_loss.1} parent=0 // pred_region
    _
  $region25: #{fhalf_with_logits_loss.1} parent=0 // pred_fallthru
    _

</llo_original>
